<compile_context>
chip_gen: v7x
topology: tpu7x:2x2x1
jax: 0.10.0
libtpu: 0.0.40
codegen_flags: <defaults>
</compile_context>

<pallas_src>
import functools

import jax
import jax.numpy as jnp
from jax.experimental import pallas as pl
from jax.experimental.pallas import tpu as pltpu


def _soft_attention_kernel(has_mask, *refs):
    if has_mask:
        reps_ref, w_ref, b_ref, mask_ref, out_ref, wts_ref = refs
    else:
        reps_ref, w_ref, b_ref, out_ref, wts_ref = refs
        mask_ref = None

    reps = reps_ref[...]                         # (TB, S, H)
    w = w_ref[...]                               # (1, H)
    b = b_ref[0, 0]                              # scalar bias from SMEM

    # --- Linear(H, 1): scores[b, s] = <reps[b, s, :], w> + b ---
    # VPU broadcast-multiply + XLU lane-reduce over H (keeps the MXU free, no squeeze).
    scores = jnp.sum(reps * w[None, :, :], axis=-1) + b     # (TB, S)

    # --- optional mask (torch: attn_scores = mask * attn_scores) ---
    if has_mask:
        scores = mask_ref[...] * scores                     # (TB, S)

    # --- softmax over the sequence axis (last axis of the (TB, S) tile) ---
    m = jnp.max(scores, axis=-1, keepdims=True)             # (TB, 1)
    e = jnp.exp(scores - m)                                  # (TB, S)
    denom = jnp.sum(e, axis=-1, keepdims=True)               # (TB, 1)
    wts = e * pl.reciprocal(denom, approx=False)             # exact: weights sum to 1

    # --- weighted sum over seq on the MXU: (TB,1,S) @ (TB,S,H) -> (TB,1,H) ---
    attn = jnp.einsum(
        "bqs,bsh->bqh", wts[:, None, :], reps,
        preferred_element_type=jnp.float32,
    )
    out_ref[...] = attn[:, 0, :].astype(out_ref.dtype)       # (TB, H)
    wts_ref[...] = wts.astype(wts_ref.dtype)                 # lane-dense (TB, S)


def _choose_block_batch(B, S, H, itemsize, target_bytes=2 * 1024 * 1024):
    """Pick a batch tile: ~2 MiB of reps per block, multiple of 8 (or full B)."""
    per_row = max(S * H * itemsize, 1)
    want = max(8, (target_bytes // per_row) // 8 * 8)
    if B <= 8 or B <= want:
        return B
    tb = (want // 8) * 8
    while tb >= 8:
        if B % tb == 0:
            return tb
        tb -= 8
    return B


@functools.partial(jax.jit, static_argnames=("block_batch",))
def soft_attention(reps, w, b, mask=None, *, block_batch=None):
    """Pallas SoftAttention forward.

    reps: (B, S, H)   w: (1, H) = nn.Linear(H,1).weight   b: (1,) = bias
    mask: (B, S) or None
    Returns (attn_out (B, H), attn_weights (B, S, 1))  — matches torch semantics.
    """
    B, S, H = reps.shape
    dtype = reps.dtype
    itemsize = jnp.dtype(dtype).itemsize

    tb = block_batch if block_batch is not None else _choose_block_batch(B, S, H, itemsize)
    assert B % tb == 0 and (tb == B or tb % 8 == 0), (
        f"block_batch={tb} must divide B={B} and be a multiple of 8 (or equal B)")
    grid = (B // tb,)

    b2 = jnp.reshape(b, (1, 1)).astype(dtype)

    reps_spec = pl.BlockSpec((tb, S, H), lambda i: (i, 0, 0))
    w_spec = pl.BlockSpec((1, H), lambda i: (0, 0))
    b_spec = pl.BlockSpec(memory_space=pltpu.MemorySpace.SMEM)   # scalar bias in SMEM
    out_spec = pl.BlockSpec((tb, H), lambda i: (i, 0))
    wts_spec = pl.BlockSpec((tb, S), lambda i: (i, 0))           # lane-dense output

    has_mask = mask is not None
    in_specs = [reps_spec, w_spec, b_spec]
    args = [reps, w.astype(dtype), b2]
    if has_mask:
        in_specs.append(pl.BlockSpec((tb, S), lambda i: (i, 0)))
        args.append(mask.astype(dtype))

    out_shape = (
        jax.ShapeDtypeStruct((B, H), dtype),
        jax.ShapeDtypeStruct((B, S), dtype),
    )

    attn_out, wts = pl.pallas_call(
        functools.partial(_soft_attention_kernel, has_mask),
        out_shape=out_shape,
        grid=grid,
        in_specs=in_specs,
        out_specs=(out_spec, wts_spec),
        compiler_params=pltpu.CompilerParams(
            dimension_semantics=("parallel",),
        ),
    )(*args)

    # Torch returns (B, S, 1) weights; add the trailing axis outside the kernel.
    return attn_out, wts[:, :, None]


def _reference(reps, w, b, mask=None):
    scores = jnp.einsum("bsh,oh->bs", reps, w) + b[0]
    if mask is not None:
        scores = mask * scores
    wts = jax.nn.softmax(scores, axis=1)[:, :, None]
    out = jnp.sum(reps * wts, axis=1)
    return out, wts


if __name__ == "__main__":
    key = jax.random.PRNGKey(0)
    k_reps, k_w, k_b, k_mask, k_reps2, k_mask2 = jax.random.split(key, 6)

    # ---- Case 1: toy shapes implied by the module (batch=2, seq=8, hidden=32) ----
    B, S, H = 2, 8, 32
    reps = jax.random.normal(k_reps, (B, S, H), dtype=jnp.float32)
    bound = 1.0 / (H ** 0.5)   # nn.Linear(hidden, 1) default init range
    w = jax.random.uniform(k_w, (1, H), minval=-bound, maxval=bound, dtype=jnp.float32)
    b = jax.random.uniform(k_b, (1,), minval=-bound, maxval=bound, dtype=jnp.float32)
    mask = (jax.random.uniform(k_mask, (B, S)) > 0.3).astype(jnp.float32)

    out_m, wts_m = soft_attention(reps, w, b, mask)
    out_n, wts_n = soft_attention(reps, w, b, None)
    jax.block_until_ready((out_m, wts_m, out_n, wts_n))

    ref_m = _reference(reps, w, b, mask)
    ref_n = _reference(reps, w, b, None)
    assert jnp.allclose(out_m, ref_m[0], atol=1e-5, rtol=1e-5)
    assert jnp.allclose(wts_m, ref_m[1], atol=1e-5, rtol=1e-5)
    assert jnp.allclose(out_n, ref_n[0], atol=1e-5, rtol=1e-5)
    assert jnp.allclose(wts_n, ref_n[1], atol=1e-5, rtol=1e-5)

    # ---- Case 2: exercise the batch-tiled grid path (B=16, TB=8 -> 2 grid steps) ----
    B2, S2, H2 = 16, 8, 128
    reps2 = jax.random.normal(k_reps2, (B2, S2, H2), dtype=jnp.float32)
    bound2 = 1.0 / (H2 ** 0.5)
    w2 = jax.random.uniform(k_w, (1, H2), minval=-bound2, maxval=bound2, dtype=jnp.float32)
    b2_ = jax.random.uniform(k_b, (1,), minval=-bound2, maxval=bound2, dtype=jnp.float32)
    mask2 = (jax.random.uniform(k_mask2, (B2, S2)) > 0.3).astype(jnp.float32)

    out2, wts2 = soft_attention(reps2, w2, b2_, mask2, block_batch=8)
    jax.block_until_ready((out2, wts2))
    ref2 = _reference(reps2, w2, b2_, mask2)
    assert jnp.allclose(out2, ref2[0], atol=1e-5, rtol=1e-5)
    assert jnp.allclose(wts2, ref2[1], atol=1e-5, rtol=1e-5)

    print("KERNEL_OK")
</pallas_src>

<mosaic_0001>
module attributes {stable_mosaic.version = 11 : i64} {
  func.func @_soft_attention_kernel(%arg0: i32, %arg1: memref<2x8x32xf32, #tpu.memory_space<vmem>>, %arg2: memref<1x32xf32, #tpu.memory_space<vmem>>, %arg3: memref<1x1xf32, #tpu.memory_space<smem>>, %arg4: memref<2x8xf32, #tpu.memory_space<vmem>>, %arg5: memref<2x32xf32, #tpu.memory_space<vmem>>, %arg6: memref<2x8xf32, #tpu.memory_space<vmem>>) attributes {dimension_semantics = [#tpu.dimension_semantics<parallel>], iteration_bounds = array<i64: 1>, scalar_prefetch = 0 : i64, scratch_operands = 0 : i64, tpu.core_type = #tpu.core_type<tc>, window_params = [{transform_indices = @transform_0, window_bounds = array<i64: 2, 8, 32>}, {pipeline_mode = #tpu.pipeline_mode<synchronous>, transform_indices = @transform_1, window_bounds = array<i64: 1, 32>}, {transform_indices = @transform_2, window_bounds = array<i64: 1, 1>}, {transform_indices = @transform_3, window_bounds = array<i64: 2, 8>}, {transform_indices = @transform_4, window_bounds = array<i64: 2, 32>}, {transform_indices = @transform_5, window_bounds = array<i64: 2, 8>}]} {
    %c0 = arith.constant 0 : index
    %c0_0 = arith.constant 0 : index
    %c0_1 = arith.constant 0 : index
    %0 = vector.load %arg1[%c0, %c0_0, %c0_1] : memref<2x8x32xf32, #tpu.memory_space<vmem>>, vector<2x8x32xf32>
    %c0_2 = arith.constant 0 : index
    %c0_3 = arith.constant 0 : index
    %1 = vector.load %arg2[%c0_2, %c0_3] : memref<1x32xf32, #tpu.memory_space<vmem>>, vector<1x32xf32>
    %c0_4 = arith.constant 0 : index
    %c0_5 = arith.constant 0 : index
    %2 = memref.load %arg3[%c0_4, %c0_5] : memref<1x1xf32, #tpu.memory_space<smem>>
    %3 = vector.shape_cast %1 : vector<1x32xf32> to vector<1x1x32xf32>
    %4 = vector.broadcast %3 : vector<1x1x32xf32> to vector<2x8x32xf32>
    %5 = arith.mulf %0, %4 : vector<2x8x32xf32>
    %cst = arith.constant dense<0.000000e+00> : vector<2x8xf32>
    %6 = vector.multi_reduction <add>, %5, %cst [2] : vector<2x8x32xf32> to vector<2x8xf32>
    %7 = vector.broadcast %2 : f32 to vector<2x8xf32>
    %8 = arith.addf %6, %7 : vector<2x8xf32>
    %c0_6 = arith.constant 0 : index
    %c0_7 = arith.constant 0 : index
    %9 = vector.load %arg4[%c0_6, %c0_7] : memref<2x8xf32, #tpu.memory_space<vmem>>, vector<2x8xf32>
    %10 = arith.mulf %9, %8 : vector<2x8xf32>
    %cst_8 = arith.constant dense<0xFF800000> : vector<2xf32>
    %11 = vector.multi_reduction <maximumf>, %10, %cst_8 [1] : vector<2x8xf32> to vector<2xf32>
    %12 = vector.shape_cast %11 : vector<2xf32> to vector<2x1xf32>
    %13 = vector.broadcast %12 : vector<2x1xf32> to vector<2x8xf32>
    %14 = arith.subf %10, %13 : vector<2x8xf32>
    %15 = math.exp %14 : vector<2x8xf32>
    %cst_9 = arith.constant dense<0.000000e+00> : vector<2xf32>
    %16 = vector.multi_reduction <add>, %15, %cst_9 [1] : vector<2x8xf32> to vector<2xf32>
    %17 = vector.shape_cast %16 : vector<2xf32> to vector<2x1xf32>
    %18 = tpu.reciprocal %17 : vector<2x1xf32> -> vector<2x1xf32>
    %19 = vector.broadcast %18 : vector<2x1xf32> to vector<2x8xf32>
    %20 = arith.mulf %15, %19 : vector<2x8xf32>
    %21 = vector.shape_cast %20 : vector<2x8xf32> to vector<2x1x8xf32>
    "tpu.trace_start"() <{level = 10 : i32, message = "bqs,bsh->bqh"}> : () -> ()
    %cst_10 = arith.constant dense<0.000000e+00> : vector<2x1x32xf32>
    %22 = tpu.matmul %21, %0, %cst_10 {dimension_numbers = #tpu.dot_dimension_numbers<[2], [1], [1], [2], [0, 0, 0, 1, 1, 2], [0], [0]>} : vector<2x1x8xf32>, vector<2x8x32xf32>, vector<2x1x32xf32> -> vector<2x1x32xf32>
    "tpu.trace_stop"() : () -> ()
    %23 = vector.shape_cast %22 : vector<2x1x32xf32> to vector<2x32xf32>
    %c0_11 = arith.constant 0 : index
    %c0_12 = arith.constant 0 : index
    %24 = vector.load %arg5[%c0_11, %c0_12] : memref<2x32xf32, #tpu.memory_space<vmem>>, vector<2x32xf32>
    tpu.vector_store %arg5[%c0_11, %c0_12], %23 {strides = array<i32>} : memref<2x32xf32, #tpu.memory_space<vmem>>, vector<2x32xf32>,
    %c0_13 = arith.constant 0 : index
    %c0_14 = arith.constant 0 : index
    %25 = vector.load %arg6[%c0_13, %c0_14] : memref<2x8xf32, #tpu.memory_space<vmem>>, vector<2x8xf32>
    tpu.vector_store %arg6[%c0_13, %c0_14], %20 {strides = array<i32>} : memref<2x8xf32, #tpu.memory_space<vmem>>, vector<2x8xf32>,
    return
  }
  func.func @transform_0(%arg0: i32) -> (i32, i32, i32) {
    %c0_i32 = arith.constant 0 : i32
    %c0_i32_0 = arith.constant 0 : i32
    %c0_i32_1 = arith.constant 0 : i32
    return %arg0, %c0_i32, %c0_i32_0 : i32, i32, i32
  }
  func.func @transform_1(%arg0: i32) -> (i32, i32) {
    %c0_i32 = arith.constant 0 : i32
    %c0_i32_0 = arith.constant 0 : i32
    %c0_i32_1 = arith.constant 0 : i32
    return %c0_i32, %c0_i32_0 : i32, i32
  }
  func.func @transform_2(%arg0: i32) -> (i32, i32) {
    %c0_i32 = arith.constant 0 : i32
    %c0_i32_0 = arith.constant 0 : i32
    %c0_i32_1 = arith.constant 0 : i32
    return %c0_i32, %c0_i32_0 : i32, i32
  }
  func.func @transform_3(%arg0: i32) -> (i32, i32) {
    %c0_i32 = arith.constant 0 : i32
    %c0_i32_0 = arith.constant 0 : i32
    return %arg0, %c0_i32 : i32, i32
  }
  func.func @transform_4(%arg0: i32) -> (i32, i32) {
    %c0_i32 = arith.constant 0 : i32
    %c0_i32_0 = arith.constant 0 : i32
    return %arg0, %c0_i32 : i32, i32
  }
  func.func @transform_5(%arg0: i32) -> (i32, i32) {
    %c0_i32 = arith.constant 0 : i32
    %c0_i32_0 = arith.constant 0 : i32
    return %arg0, %c0_i32 : i32, i32
  }
}

</mosaic_0001>

<llo_original>
// kernel: soft_attention.1
$region0: #{soft_attention.1}
  #allocation0 [shape = 'u32[]', space=smem, size = 0x4, offset = 0x4, fixed_abs, tag = 'smem constant byte address 0x4 - core index']
  #allocation1 [shape = 'u32[144,128]{1,0:T(1,128)}', space=vmem, size = 0x12000, scoped, tag = 'internal scratch']
  #allocation2 [shape = 'f32[1,1]{1,0:T(1,128)S(6)}', space=smem, size = 0x200, scoped, tag = 'scoped memory for soft_attention.1']
  %s0 = inlined_call_operand.hbm [shape: f32[2,8,32], index: 0, kind: input, shape index: {}]
  %s1 = inlined_call_operand.vmem [shape: f32[1,32], index: 1, kind: input, shape index: {}]
  %s2 = inlined_call_operand.<no memory space> [shape: f32[1,1], index: 2, kind: input, shape index: {}]
  %s3 = inlined_call_operand.vmem [shape: f32[2,8], index: 3, kind: input, shape index: {}]
  %s4 = inlined_call_operand.hbm [shape: f32[2,32], index: 4, kind: output, shape index: {0}]
  %s5 = inlined_call_operand.hbm [shape: f32[2,8], index: 5, kind: output, shape index: {1}]
  %6 = xla_tuple %s4, %s5
  %s7 = sld [smem:[#allocation0]]
  $region38: #{soft_attention.1} parent=0
    _
  %s9 = ssub.s32 1, %s7
  %s10 = scalar_select 0, %s9, %s7
  %11 = sst [smem:[#allocation2]] %s2
  $region1: #{soft_attention.1} parent=0
    #allocation3 [shape = 'u8[8192]{0}', space=vmem, size = 0x2000, scoped, tag = 'input window, operand 0, single buffered']
    #allocation4 [shape = 's32[1]{0}', space=sflag, size = 0x4, scoped, tag = 'scoped memory for soft_attention.1']
    #allocation5 [shape = 's32[1]{0}', space=sflag, size = 0x4, scoped, tag = 'scoped memory for soft_attention.1']
    #allocation6 [shape = 'u8[1024]{0}', space=vmem, size = 0x400, scoped, tag = 'output window, operand 0, single buffered']
    #allocation7 [shape = 'u8[1024]{0}', space=vmem, size = 0x400, scoped, tag = 'output window, operand 1, single buffered']
    #allocation8 [shape = 's32[1]{0}', space=sflag, size = 0x4, scoped, tag = 'scoped memory for soft_attention.1']
    %12 = vsyncpa [#allocation4], 0
    %13 = vsyncpa [#allocation5], 0
    %14 = vsyncpa [#allocation8], 0
    // Predicated region
    $region2: #{soft_attention.1} parent=1 // pred_check
      _
    $region3: #{soft_attention.1} parent=1 // pred_check_branch
      %16 = sbr.rel (0) target = $region5
    $region4: #{soft_attention.1} parent=1 // pred_region
      %s18 = ssub.s32 256, 256
      %19 = vsyncadd [#allocation4], %s18
      %s20 = sshll.u32 [#allocation3], 4
      %s21 = int_to_ptr.vmem [resolvable:$true] %s20
      %26 = dma.hbm_to_vmem [thread:$0]  %s0, 256, %s21, [#allocation4], 128, 128, 8
    $region5: #{soft_attention.1} parent=1 // pred_fallthru
      _
    // Predicated region
    $region6: #{soft_attention.1} parent=1 // pred_check
      _
    $region7: #{soft_attention.1} parent=1 // pred_check_branch
      %28 = sbr.rel (0) target = $region9
    $region8: #{soft_attention.1} parent=1 // pred_region
      _
    $region9: #{soft_attention.1} parent=1 // pred_fallthru
      _
    // Predicated region
    $region10: #{soft_attention.1} parent=1 // pred_check
      _
    $region11: #{soft_attention.1} parent=1 // pred_check_branch
      %30 = sbr.rel (0) target = $region13
    $region12: #{soft_attention.1} parent=1 // pred_region
      _
    $region13: #{soft_attention.1} parent=1 // pred_fallthru
      _
    // Predicated region
    $region14: #{soft_attention.1} parent=1 // pred_check
      _
    $region15: #{soft_attention.1} parent=1 // pred_check_branch
      %32 = sbr.rel (0) target = $region17
    $region16: #{soft_attention.1} parent=1 // pred_region
      _
    $region17: #{soft_attention.1} parent=1 // pred_fallthru
      _
    // Predicated region
    $region18: #{soft_attention.1} parent=1 // pred_check
      _
    $region19: #{soft_attention.1} parent=1 // pred_check_branch
      %34 = sbr.rel (0) target = $region21
    $region20: #{soft_attention.1} parent=1 // pred_region
      %35 = dma.done [#allocation4], 256
    $region21: #{soft_attention.1} parent=1 // pred_fallthru
      _
    %v36 = vld [vmem:[#allocation3] sm:$0xff]
    %v37 = vld [vmem:[#allocation3 + $0x8] sm:$0xff]
    %v38 = vld [vmem:[%s1] sm:$0x1]
    %s39 = sld [smem:[#allocation2]]
    %v41 = vlaneseq
    %v42 = vshrl.u32 %v41, 7
    %v43 = vsub.s32 0, %v42
    %v44 = vrot.slane %v38, %v43
    %v46 = vmul.f32 %v36, %v44
    %v47 = vmul.f32 %v37, %v44
    %vm48 = vcmask 261120
    %v49 = vsel %vm48, %v46, 0.0
    %50 = vadd.xlane.f32.xlu0 %v49
    %v51 = vpop.xlane.xlu0 %50
    %v52 = vsel %vm48, %v47, 0.0
    %53 = vadd.xlane.f32.xlu0 %v52
    %v54 = vpop.xlane.xlu0 %53
    %v55 = vstv %s39
    %v56 = vadd.f32 %v51, %v55
    %v57 = vadd.f32 %v54, %v55
    %v58 = vld [vmem:[%s3] sm:$0x3]
    %v61 = vlaneseq
    %v62 = vand.u32 %v61, 127
    %v63 = vlaneseq
    %v64 = vshrl.u32 %v63, 7
    %v65 = vsub.s32 %v62, %v64
    %v66 = vrot.slane %v56, %v65
    %v67 = vlaneseq
    %v68 = vshrl.u32 %v67, 7
    %v69 = vsub.s32 %v62, %v68
    %v70 = vrot.slane %v57, %v69
    %vm71 = vcmask 1041409
    %v72 = vsel %vm71, %v70, %v66
    %v74 = vmul.f32 %v58, %v72
    %vm75 = vcmask 58368
    %v76 = vsel %vm75, %v74, -inf
    %77 = vmax.xlane.f32.xlu0 %v76
    %v78 = vpop.xlane.xlu0 %77
    %v79 = vsub.f32 %v74, %v78
    %v80 = vmul.f32 %v79, 1.442695
    %v81 = vpow.pop %v80
    %v82 = vsel %vm75, %v81, 0.0
    %83 = vadd.xlane.f32.xlu0 %v82
    %v84 = vpop.xlane.xlu0 %83
    %v85 = vrcp.pop %v84
    %v86 = vmul.f32 %v81, %v85
    %v89 = vunpack.c.l.s4 1966171168
    %v90 = vunpack.c.0.s8 %v89
    %v91 = vlaneseq
    %v92 = vshrl.u32 %v91, 7
    %v93 = vsub.s32 %v90, %v92
    %v94 = vrot.slane %v86, %v93
    %v95 = vcombine.high %v94, %v94
    %v97 = vunpack.c.l.s4 1966171168
    %v98 = vunpack.c.0.s8 %v97
    %v99 = vlaneseq
    %v100 = vshrl.u32 %v99, 7
    %v101 = vsub.s32 %v98, %v100
    %v102 = vrot.slane %v94, %v101
    %v104 = vunpack.c.l.s4 1966171168
    %v105 = vunpack.c.0.s8 %v104
    %v106 = vlaneseq
    %v107 = vshrl.u32 %v106, 7
    %v108 = vsub.s32 %v105, %v107
    %v109 = vrot.slane %v95, %v108
    %vm110 = vcmask 64512
    %v111 = vsel %vm110, %v102, 0
    %113 = vmatprep.subr.mxu0 0.0
    %114 = vmatpush1.msra.mxu0 %v36
    %115 = vmatprep.subr.mxu0 0.0
    %116 = vmatpush1.msra.mxu0 0.0
    %117 = vmatprep.subr.mxu0 0.0
    %118 = vmatpush1.msra.mxu0 0.0
    %119 = vmatprep.subr.mxu0 0.0
    %120 = vmatpush1.msra.mxu0 0.0
    %121 = vmatprep.subr.mxu0 0.0
    %122 = vmatpush1.msra.mxu0 0.0
    %123 = vmatprep.subr.mxu0 0.0
    %124 = vmatpush1.msra.mxu0 0.0
    %125 = vmatprep.subr.mxu0 0.0
    %126 = vmatpush1.msra.mxu0 0.0
    %127 = vmatprep.subr.mxu0 0.0
    %128 = vmatpush1.msra.mxu0 0.0
    %129 = vmatprep.subr.mxu0 0.0
    %130 = vmatpush1.msra.mxu0 0.0
    %131 = vmatprep.subr.mxu0 0.0
    %132 = vmatpush1.msra.mxu0 0.0
    %133 = vmatprep.subr.mxu0 0.0
    %134 = vmatpush1.msra.mxu0 0.0
    %135 = vmatprep.subr.mxu0 0.0
    %136 = vmatpush1.msra.mxu0 0.0
    %137 = vmatprep.subr.mxu0 0.0
    %138 = vmatpush1.msra.mxu0 0.0
    %139 = vmatprep.subr.mxu0 0.0
    %140 = vmatpush1.msra.mxu0 0.0
    %141 = vmatprep.subr.mxu0 0.0
    %142 = vmatpush1.msra.mxu0 0.0
    %143 = vmatprep.subr.mxu0 0.0
    %144 = vmatpush1.msra.mxu0 0.0
    %145 = vmatprep.subr.mxu0 0.0
    %146 = vmatpush1.msra.mxu0 0.0
    %147 = vmatprep.subr.mxu0 0.0
    %148 = vmatpush1.msra.mxu0 0.0
    %149 = vmatprep.subr.mxu0 0.0
    %150 = vmatpush1.msra.mxu0 0.0
    %151 = vmatprep.subr.mxu0 0.0
    %152 = vmatpush1.msra.mxu0 0.0
    %153 = vmatprep.subr.mxu0 0.0
    %154 = vmatpush1.msra.mxu0 0.0
    %155 = vmatprep.subr.mxu0 0.0
    %156 = vmatpush1.msra.mxu0 0.0
    %157 = vmatprep.subr.mxu0 0.0
    %158 = vmatpush1.msra.mxu0 0.0
    %159 = vmatprep.subr.mxu0 0.0
    %160 = vmatpush1.msra.mxu0 0.0
    %161 = vmatprep.subr.mxu0 0.0
    %162 = vmatpush1.msra.mxu0 0.0
    %163 = vmatprep.subr.mxu0 0.0
    %164 = vmatpush1.msra.mxu0 0.0
    %165 = vmatprep.subr.mxu0 0.0
    %166 = vmatpush1.msra.mxu0 0.0
    %167 = vmatprep.subr.mxu0 0.0
    %168 = vmatpush1.msra.mxu0 0.0
    %169 = vmatprep.subr.mxu0 0.0
    %170 = vmatpush1.msra.mxu0 0.0
    %171 = vmatprep.subr.mxu0 0.0
    %172 = vmatpush1.msra.mxu0 0.0
    %173 = vmatprep.subr.mxu0 0.0
    %174 = vmatpush1.msra.mxu0 0.0
    %175 = vmatprep.subr.mxu0 0.0
    %176 = vmatpush1.msra.mxu0 0.0
    %177 = vmatprep.mubr.f32.mxu0 0.0
    %178 = vmatmul.mubr.f32.gmra.mrb[0].mxu0 %v111
    %v179 = vpop.f32.mrb[0].mxu0
    %v180 = vadd.f32 0.0, %v179
    %v181 = vpop.f32.mrb[0].mxu0
    %182 = vdwg.mxu0
    %v183 = vsel %vm110, %v109, 0
    %185 = vmatprep.subr.mxu0 0.0
    %186 = vmatpush1.msra.mxu0 %v37
    %187 = vmatprep.subr.mxu0 0.0
    %188 = vmatpush1.msra.mxu0 0.0
    %189 = vmatprep.subr.mxu0 0.0
    %190 = vmatpush1.msra.mxu0 0.0
    %191 = vmatprep.subr.mxu0 0.0
    %192 = vmatpush1.msra.mxu0 0.0
    %193 = vmatprep.subr.mxu0 0.0
    %194 = vmatpush1.msra.mxu0 0.0
    %195 = vmatprep.subr.mxu0 0.0
    %196 = vmatpush1.msra.mxu0 0.0
    %197 = vmatprep.subr.mxu0 0.0
    %198 = vmatpush1.msra.mxu0 0.0
    %199 = vmatprep.subr.mxu0 0.0
    %200 = vmatpush1.msra.mxu0 0.0
    %201 = vmatprep.subr.mxu0 0.0
    %202 = vmatpush1.msra.mxu0 0.0
    %203 = vmatprep.subr.mxu0 0.0
    %204 = vmatpush1.msra.mxu0 0.0
    %205 = vmatprep.subr.mxu0 0.0
    %206 = vmatpush1.msra.mxu0 0.0
    %207 = vmatprep.subr.mxu0 0.0
    %208 = vmatpush1.msra.mxu0 0.0
    %209 = vmatprep.subr.mxu0 0.0
    %210 = vmatpush1.msra.mxu0 0.0
    %211 = vmatprep.subr.mxu0 0.0
    %212 = vmatpush1.msra.mxu0 0.0
    %213 = vmatprep.subr.mxu0 0.0
    %214 = vmatpush1.msra.mxu0 0.0
    %215 = vmatprep.subr.mxu0 0.0
    %216 = vmatpush1.msra.mxu0 0.0
    %217 = vmatprep.subr.mxu0 0.0
    %218 = vmatpush1.msra.mxu0 0.0
    %219 = vmatprep.subr.mxu0 0.0
    %220 = vmatpush1.msra.mxu0 0.0
    %221 = vmatprep.subr.mxu0 0.0
    %222 = vmatpush1.msra.mxu0 0.0
    %223 = vmatprep.subr.mxu0 0.0
    %224 = vmatpush1.msra.mxu0 0.0
    %225 = vmatprep.subr.mxu0 0.0
    %226 = vmatpush1.msra.mxu0 0.0
    %227 = vmatprep.subr.mxu0 0.0
    %228 = vmatpush1.msra.mxu0 0.0
    %229 = vmatprep.subr.mxu0 0.0
    %230 = vmatpush1.msra.mxu0 0.0
    %231 = vmatprep.subr.mxu0 0.0
    %232 = vmatpush1.msra.mxu0 0.0
    %233 = vmatprep.subr.mxu0 0.0
    %234 = vmatpush1.msra.mxu0 0.0
    %235 = vmatprep.subr.mxu0 0.0
    %236 = vmatpush1.msra.mxu0 0.0
    %237 = vmatprep.subr.mxu0 0.0
    %238 = vmatpush1.msra.mxu0 0.0
    %239 = vmatprep.subr.mxu0 0.0
    %240 = vmatpush1.msra.mxu0 0.0
    %241 = vmatprep.subr.mxu0 0.0
    %242 = vmatpush1.msra.mxu0 0.0
    %243 = vmatprep.subr.mxu0 0.0
    %244 = vmatpush1.msra.mxu0 0.0
    %245 = vmatprep.subr.mxu0 0.0
    %246 = vmatpush1.msra.mxu0 0.0
    %247 = vmatprep.subr.mxu0 0.0
    %248 = vmatpush1.msra.mxu0 0.0
    %249 = vmatprep.mubr.f32.mxu0 0.0
    %250 = vmatmul.mubr.f32.gmra.mrb[0].mxu0 %v183
    %v251 = vpop.f32.mrb[0].mxu0
    %v252 = vadd.f32 0.0, %v251
    %v253 = vpop.f32.mrb[0].mxu0
    %254 = vdwg.mxu0
    %v257 = vrot.slane %v252, 7
    %v258 = vsel %vm71, %v257, %v180
    %vm260 = vcmask 254976
    %261 = vst.msk [vmem:[#allocation6] sm:$0x3] %vm260, %v258
    %262 = vst.msk [vmem:[#allocation7] sm:$0x3] %vm75, %v86
    // Predicated region
    $region22: #{soft_attention.1} parent=1 // pred_check
      _
    $region23: #{soft_attention.1} parent=1 // pred_check_branch
      %264 = sbr.rel (0) target = $region25
    $region24: #{soft_attention.1} parent=1 // pred_region
      %s266 = ssub.s32 32, 32
      %267 = vsyncadd [#allocation5], %s266
      %s269 = sshll.u32 [#allocation6], 4
      %s270 = int_to_ptr.vmem [resolvable:$true] %s269
      %272 = dma.vmem_to_hbm [thread:$0]  %s270, 32, %s4, [#allocation5]
    $region25: #{soft_attention.1} parent=1 // pred_fallthru
      _
    // Predicated region
    $region26: #{soft_attention.1} parent=1 // pred_check
      _
    $region27: #{soft_attention.1} parent=1 // pred_check_branch
      %274 = sbr.rel (0) target = $region29
    $region28: #{soft_attention.1} parent=1 // pred_region
      %s276 = ssub.s32 32, 32
      %277 = vsyncadd [#allocation8], %s276
      %s279 = sshll.u32 [#allocation7], 4
      %s280 = int_to_ptr.vmem [resolvable:$true] %s279
      %282 = dma.vmem_to_hbm [thread:$0]  %s280, 32, %s5, [#allocation8]
    $region29: #{soft_attention.1} parent=1 // pred_fallthru
      _
    // Predicated region
    $region30: #{soft_attention.1} parent=1 // pred_check
      _
    $region31: #{soft_attention.1} parent=1 // pred_check_branch
      %284 = sbr.rel (0) target = $region33
    $region32: #{soft_attention.1} parent=1 // pred_region
      %285 = dma.done [#allocation5], 32
    $region33: #{soft_attention.1} parent=1 // pred_fallthru
      _
    // Predicated region
    $region34: #{soft_attention.1} parent=1 // pred_check
      _
    $region35: #{soft_attention.1} parent=1 // pred_check_branch
      %287 = sbr.rel (0) target = $region37
    $region36: #{soft_attention.1} parent=1 // pred_region
      %288 = dma.done [#allocation8], 32
    $region37: #{soft_attention.1} parent=1 // pred_fallthru
      _
    %289 = vsyncpa [#allocation4], 1
    %290 = vsyncpa [#allocation5], 1
    %291 = vsyncpa [#allocation8], 1

</llo_original>
